<compile_context>
chip_gen: v6e
topology: v6e:2x2x1
jax: 0.10.0
libtpu: 0.0.40
codegen_flags: <defaults>
</compile_context>

<pallas_src>
import functools
import math

import jax
import jax.numpy as jnp
from jax.experimental import pallas as pl
from jax.experimental.pallas import tpu as pltpu


def _round_up(n, m):
    return ((n + m - 1) // m) * m


def fourier_mlp_kernel(x_ref, wf2_ref, phase_ref, wx_ref, wcs_ref, b_ref, o_ref):
    """One batch tile of the FourierMlp forward.

    x_ref    : [TILE_B, in]      full input rows (h and fourier part together)
    wf2_ref  : [in, 2*Fs]        [2*pi*W | 2*pi*W] with zero rows on the h part
    phase_ref: [1, 2*Fs]         [pi/2]*Fs ++ [0]*Fs  (sin(t+pi/2) == cos(t))
    wx_ref   : [in, out]         last_fc rows for h, zero rows on fourier part
    wcs_ref  : [2*Fs, out]       last_fc rows for [cos, sin] features
    b_ref    : [1, out]          last_fc bias
    o_ref    : [TILE_B, out]
    """
    x = x_ref[...]
    # RFF projection (MXU, f32 acc); 2*pi already folded into wf2.
    proj = jnp.dot(x, wf2_ref[...], preferred_element_type=jnp.float32)
    # Single sin over the full 2*Fs lanes produces [cos | sin] via the phase row.
    feats = jnp.sin(proj + phase_ref[...])                    # [TILE_B, 2*Fs]
    # Final linear over the virtual concat [h, cos, sin] == two partial matmuls.
    out = jnp.dot(x, wx_ref[...], preferred_element_type=jnp.float32)
    out = out + jnp.dot(feats, wcs_ref[...], preferred_element_type=jnp.float32)
    out = out + b_ref[...]                                    # [1, out] broadcast
    o_ref[...] = out.astype(o_ref.dtype)


@functools.partial(jax.jit, static_argnames=("fourier_input_size", "fourier_size",
                                             "tile_b"))
def fourier_mlp_forward(x, w_fourier, w_last, b_last,
                        *, fourier_input_size, fourier_size, tile_b=8192):
    """x: [B, input_size]; w_fourier: [F_in, Fs];
    w_last: [H + 2*Fs, output_size] (pre-transposed from torch [out, in]);
    b_last: [1, output_size]."""
    B, input_size = x.shape
    f_in = fourier_input_size
    fs = fourier_size
    H = input_size - f_in
    output_size = w_last.shape[1]

    # ---- Wrapper-side weight plumbing (tiny one-time arrays) ------------------
    # Fourier weight with 2*pi folded in, duplicated for [cos | sin] columns and
    # zero-padded on the h rows so it multiplies the UNSPLIT x directly.
    wf_scaled = (jnp.float32(2.0 * math.pi) * w_fourier).astype(jnp.float32)
    wf2 = jnp.concatenate([wf_scaled, wf_scaled], axis=1)          # [F_in, 2*Fs]
    wf2 = jnp.concatenate([jnp.zeros((H, 2 * fs), jnp.float32), wf2], axis=0)
    # Phase row: sin(t + pi/2) == cos(t) for the first Fs columns.
    phase = jnp.concatenate([
        jnp.full((1, fs), 0.5 * math.pi, jnp.float32),
        jnp.zeros((1, fs), jnp.float32)], axis=1)                  # [1, 2*Fs]
    # last_fc rows for h, zero-padded on the fourier rows (fourier part of x does
    # not feed the final linear directly in the reference).
    w_x = jnp.concatenate([w_last[:H].astype(jnp.float32),
                           jnp.zeros((f_in, output_size), jnp.float32)], axis=0)
    w_cs = w_last[H:].astype(jnp.float32)                          # [2*Fs, out]

    # ---- Batch tiling ---------------------------------------------------------
    tile_b = max(8, _round_up(int(tile_b), 8))                 # Mosaic: mult of 8
    # Keep >= 4 grid steps when B is big enough so v7x can shard the parallel
    # axis across both TensorCores (no-op on v5e/v6e single-TC chips).
    tile_b = min(tile_b, max(8, _round_up(pl.cdiv(B, 4), 8)))
    tile_b = min(tile_b, _round_up(B, 8))                      # small B -> 1 tile
    b_pad = _round_up(B, tile_b)
    x_p = x if b_pad == B else jnp.pad(x, ((0, b_pad - B), (0, 0)))
    grid = (b_pad // tile_b,)

    out_padded = pl.pallas_call(
        fourier_mlp_kernel,
        out_shape=jax.ShapeDtypeStruct((b_pad, output_size), jnp.float32),
        grid=grid,
        in_specs=[
            # Batch-tiled activations: auto double-buffered across the grid.
            pl.BlockSpec((tile_b, input_size), lambda i: (i, 0)),
            # Weights / phase / bias: constant block index -> VMEM-resident.
            pl.BlockSpec((input_size, 2 * fs), lambda i: (0, 0)),
            pl.BlockSpec((1, 2 * fs), lambda i: (0, 0)),
            pl.BlockSpec((input_size, output_size), lambda i: (0, 0)),
            pl.BlockSpec((2 * fs, output_size), lambda i: (0, 0)),
            pl.BlockSpec((1, output_size), lambda i: (0, 0)),
        ],
        out_specs=pl.BlockSpec((tile_b, output_size), lambda i: (i, 0)),
        compiler_params=pltpu.CompilerParams(
            dimension_semantics=("parallel",),        # megacore sharding on v7x
            vmem_limit_bytes=48 * 1024 * 1024,        # big tiles, double-buffered
        ),
    )(x_p, wf2, phase, w_x, w_cs, b_last.astype(jnp.float32))

    return out_padded[:B]


def reference_forward(x, w_fourier, w_last, b_last, *, fourier_input_size):
    h = x[:, :-fourier_input_size]
    f_h = x[:, -fourier_input_size:]
    proj = f_h @ w_fourier
    h_cat = jnp.concatenate(
        [h, jnp.cos(2 * math.pi * proj), jnp.sin(2 * math.pi * proj)], axis=1)
    return h_cat @ w_last + b_last


if __name__ == "__main__":
    # Module hyper-parameters (small, consistent with the torch __init__).
    batch = 8
    input_size = 24
    fourier_input_size = 8
    fourier_size = 32
    fourier_sigma = 1.0
    output_size = 4
    init_w = 0.003

    key = jax.random.PRNGKey(0)
    k_x, k_eps, k_w, k_b, k_x2 = jax.random.split(key, 5)

    # Example input.
    x = jax.random.normal(k_x, (batch, input_size), dtype=jnp.float32)

    # Deterministic parameter setup (mirrors torch __init__ / forward).
    # TODO(synk): torch draws fresh eps every forward; here eps is fixed so the
    # kernel is deterministic and checkable against the reference.
    fourier_mean = jnp.zeros((fourier_input_size, fourier_size), jnp.float32)
    fourier_sig = fourier_sigma * jnp.ones((fourier_input_size, fourier_size),
                                           jnp.float32)
    eps = jax.random.normal(k_eps, (fourier_input_size, fourier_size), jnp.float32)
    w_fourier = fourier_mean + eps * fourier_sig          # W = mean + eps * sigma

    hidden_width = input_size - fourier_input_size
    last_in = hidden_width + 2 * fourier_size
    # torch Linear weight is [out, in]; store pre-transposed [in, out].
    w_last = jax.random.uniform(k_w, (last_in, output_size),
                                minval=-init_w, maxval=init_w, dtype=jnp.float32)
    b_last = jax.random.uniform(k_b, (1, output_size),
                                minval=-init_w, maxval=init_w, dtype=jnp.float32)

    # Small toy-size run (single tile, grid=1).
    out = fourier_mlp_forward(
        x, w_fourier, w_last, b_last,
        fourier_input_size=fourier_input_size, fourier_size=fourier_size)
    out = jax.block_until_ready(out)
    ref = reference_forward(x, w_fourier, w_last, b_last,
                            fourier_input_size=fourier_input_size)
    assert out.shape == (batch, output_size)
    assert jnp.allclose(out, ref, atol=1e-5, rtol=1e-5), "mismatch vs reference (small)"

    # Larger batched run exercising the grid + padding path (grid > 1).
    big_batch = 1000
    x_big = jax.random.normal(k_x2, (big_batch, input_size), dtype=jnp.float32)
    out_big = fourier_mlp_forward(
        x_big, w_fourier, w_last, b_last,
        fourier_input_size=fourier_input_size, fourier_size=fourier_size)
    out_big = jax.block_until_ready(out_big)
    ref_big = reference_forward(x_big, w_fourier, w_last, b_last,
                                fourier_input_size=fourier_input_size)
    assert out_big.shape == (big_batch, output_size)
    assert jnp.allclose(out_big, ref_big, atol=1e-5, rtol=1e-5), \
        "mismatch vs reference (batched/grid)"

    print("KERNEL_OK")
</pallas_src>

<mosaic_0001>
module attributes {stable_mosaic.version = 11 : i64} {
  func.func @fourier_mlp_kernel(%arg0: i32, %arg1: memref<8x24xf32, #tpu.memory_space<vmem>>, %arg2: memref<24x64xf32, #tpu.memory_space<vmem>>, %arg3: memref<1x64xf32, #tpu.memory_space<vmem>>, %arg4: memref<24x4xf32, #tpu.memory_space<vmem>>, %arg5: memref<64x4xf32, #tpu.memory_space<vmem>>, %arg6: memref<1x4xf32, #tpu.memory_space<vmem>>, %arg7: memref<8x4xf32, #tpu.memory_space<vmem>>) attributes {dimension_semantics = [#tpu.dimension_semantics<parallel>], iteration_bounds = array<i64: 1>, scalar_prefetch = 0 : i64, scratch_operands = 0 : i64, tpu.core_type = #tpu.core_type<tc>, window_params = [{transform_indices = @transform_0, window_bounds = array<i64: 8, 24>}, {pipeline_mode = #tpu.pipeline_mode<synchronous>, transform_indices = @transform_1, window_bounds = array<i64: 24, 64>}, {pipeline_mode = #tpu.pipeline_mode<synchronous>, transform_indices = @transform_2, window_bounds = array<i64: 1, 64>}, {pipeline_mode = #tpu.pipeline_mode<synchronous>, transform_indices = @transform_3, window_bounds = array<i64: 24, 4>}, {pipeline_mode = #tpu.pipeline_mode<synchronous>, transform_indices = @transform_4, window_bounds = array<i64: 64, 4>}, {pipeline_mode = #tpu.pipeline_mode<synchronous>, transform_indices = @transform_5, window_bounds = array<i64: 1, 4>}, {transform_indices = @transform_6, window_bounds = array<i64: 8, 4>}]} {
    %c0 = arith.constant 0 : index
    %c0_0 = arith.constant 0 : index
    %0 = vector.load %arg1[%c0, %c0_0] : memref<8x24xf32, #tpu.memory_space<vmem>>, vector<8x24xf32>
    %c0_1 = arith.constant 0 : index
    %c0_2 = arith.constant 0 : index
    %1 = vector.load %arg2[%c0_1, %c0_2] : memref<24x64xf32, #tpu.memory_space<vmem>>, vector<24x64xf32>
    %cst = arith.constant dense<0.000000e+00> : vector<8x64xf32>
    %2 = tpu.matmul %0, %1, %cst {dimension_numbers = #tpu.dot_dimension_numbers<[1], [0], [0], [1], [0, 0, 1, 1], [], []>} : vector<8x24xf32>, vector<24x64xf32>, vector<8x64xf32> -> vector<8x64xf32>
    %c0_3 = arith.constant 0 : index
    %c0_4 = arith.constant 0 : index
    %3 = vector.load %arg3[%c0_3, %c0_4] : memref<1x64xf32, #tpu.memory_space<vmem>>, vector<1x64xf32>
    %4 = vector.broadcast %3 : vector<1x64xf32> to vector<8x64xf32>
    %5 = arith.addf %2, %4 : vector<8x64xf32>
    %6 = math.sin %5 : vector<8x64xf32>
    %c0_5 = arith.constant 0 : index
    %c0_6 = arith.constant 0 : index
    %7 = vector.load %arg4[%c0_5, %c0_6] : memref<24x4xf32, #tpu.memory_space<vmem>>, vector<24x4xf32>
    %cst_7 = arith.constant dense<0.000000e+00> : vector<8x4xf32>
    %8 = tpu.matmul %0, %7, %cst_7 {dimension_numbers = #tpu.dot_dimension_numbers<[1], [0], [0], [1], [0, 0, 1, 1], [], []>} : vector<8x24xf32>, vector<24x4xf32>, vector<8x4xf32> -> vector<8x4xf32>
    %c0_8 = arith.constant 0 : index
    %c0_9 = arith.constant 0 : index
    %9 = vector.load %arg5[%c0_8, %c0_9] : memref<64x4xf32, #tpu.memory_space<vmem>>, vector<64x4xf32>
    %cst_10 = arith.constant dense<0.000000e+00> : vector<8x4xf32>
    %10 = tpu.matmul %6, %9, %cst_10 {dimension_numbers = #tpu.dot_dimension_numbers<[1], [0], [0], [1], [0, 0, 1, 1], [], []>} : vector<8x64xf32>, vector<64x4xf32>, vector<8x4xf32> -> vector<8x4xf32>
    %11 = arith.addf %8, %10 : vector<8x4xf32>
    %c0_11 = arith.constant 0 : index
    %c0_12 = arith.constant 0 : index
    %12 = vector.load %arg6[%c0_11, %c0_12] : memref<1x4xf32, #tpu.memory_space<vmem>>, vector<1x4xf32>
    %13 = vector.broadcast %12 : vector<1x4xf32> to vector<8x4xf32>
    %14 = arith.addf %11, %13 : vector<8x4xf32>
    %c0_13 = arith.constant 0 : index
    %c0_14 = arith.constant 0 : index
    %15 = vector.load %arg7[%c0_13, %c0_14] : memref<8x4xf32, #tpu.memory_space<vmem>>, vector<8x4xf32>
    tpu.vector_store %arg7[%c0_13, %c0_14], %14 {strides = array<i32>} : memref<8x4xf32, #tpu.memory_space<vmem>>, vector<8x4xf32>,
    return
  }
  func.func @transform_0(%arg0: i32) -> (i32, i32) {
    %c0_i32 = arith.constant 0 : i32
    %c0_i32_0 = arith.constant 0 : i32
    return %arg0, %c0_i32 : i32, i32
  }
  func.func @transform_1(%arg0: i32) -> (i32, i32) {
    %c0_i32 = arith.constant 0 : i32
    %c0_i32_0 = arith.constant 0 : i32
    %c0_i32_1 = arith.constant 0 : i32
    return %c0_i32, %c0_i32_0 : i32, i32
  }
  func.func @transform_2(%arg0: i32) -> (i32, i32) {
    %c0_i32 = arith.constant 0 : i32
    %c0_i32_0 = arith.constant 0 : i32
    %c0_i32_1 = arith.constant 0 : i32
    return %c0_i32, %c0_i32_0 : i32, i32
  }
  func.func @transform_3(%arg0: i32) -> (i32, i32) {
    %c0_i32 = arith.constant 0 : i32
    %c0_i32_0 = arith.constant 0 : i32
    %c0_i32_1 = arith.constant 0 : i32
    return %c0_i32, %c0_i32_0 : i32, i32
  }
  func.func @transform_4(%arg0: i32) -> (i32, i32) {
    %c0_i32 = arith.constant 0 : i32
    %c0_i32_0 = arith.constant 0 : i32
    %c0_i32_1 = arith.constant 0 : i32
    return %c0_i32, %c0_i32_0 : i32, i32
  }
  func.func @transform_5(%arg0: i32) -> (i32, i32) {
    %c0_i32 = arith.constant 0 : i32
    %c0_i32_0 = arith.constant 0 : i32
    %c0_i32_1 = arith.constant 0 : i32
    return %c0_i32, %c0_i32_0 : i32, i32
  }
  func.func @transform_6(%arg0: i32) -> (i32, i32) {
    %c0_i32 = arith.constant 0 : i32
    %c0_i32_0 = arith.constant 0 : i32
    return %arg0, %c0_i32 : i32, i32
  }
}

</mosaic_0001>

<llo_original>
// kernel: fourier_mlp_forward.1
$region0: #{fourier_mlp_forward.1}
  #allocation0 [shape = 'u32[]', space=smem, size = 0x4, offset = 0x4, fixed_abs, tag = 'smem constant byte address 0x4 - core index']
  #allocation1 [shape = 'u32[144,128]{1,0:T(1,128)}', space=vmem, size = 0x12000, scoped, tag = 'internal scratch']
  %s0 = inlined_call_operand.vmem [shape: f32[8,24], index: 0, kind: input, shape index: {}]
  %s1 = inlined_call_operand.vmem [shape: f32[24,64], index: 1, kind: input, shape index: {}]
  %s2 = inlined_call_operand.vmem [shape: f32[1,64], index: 2, kind: input, shape index: {}]
  %s3 = inlined_call_operand.vmem [shape: f32[24,4], index: 3, kind: input, shape index: {}]
  %s4 = inlined_call_operand.vmem [shape: f32[64,4], index: 4, kind: input, shape index: {}]
  %s5 = inlined_call_operand.vmem [shape: f32[1,4], index: 5, kind: input, shape index: {}]
  %s6 = inlined_call_operand.vmem [shape: f32[8,4], index: 6, kind: output, shape index: {}]
  %s7 = sld [smem:[#allocation0]]
  $region34: #{fourier_mlp_forward.1} parent=0
    _
  %s9 = ssub.s32 1, %s7
  %s10 = scalar_select 0, %s9, %s7
  // Predicated region
  $region2: #{fourier_mlp_forward.1} parent=0 // pred_check
    _
  $region3: #{fourier_mlp_forward.1} parent=0 // pred_check_branch
    %12 = sbr.rel (0) target = $region5
  $region4: #{fourier_mlp_forward.1} parent=0 // pred_region
    _
  $region5: #{fourier_mlp_forward.1} parent=0 // pred_fallthru
    _
  // Predicated region
  $region6: #{fourier_mlp_forward.1} parent=0 // pred_check
    _
  $region7: #{fourier_mlp_forward.1} parent=0 // pred_check_branch
    %14 = sbr.rel (0) target = $region9
  $region8: #{fourier_mlp_forward.1} parent=0 // pred_region
    _
  $region9: #{fourier_mlp_forward.1} parent=0 // pred_fallthru
    _
  // Predicated region
  $region10: #{fourier_mlp_forward.1} parent=0 // pred_check
    _
  $region11: #{fourier_mlp_forward.1} parent=0 // pred_check_branch
    %16 = sbr.rel (0) target = $region13
  $region12: #{fourier_mlp_forward.1} parent=0 // pred_region
    _
  $region13: #{fourier_mlp_forward.1} parent=0 // pred_fallthru
    _
  // Predicated region
  $region14: #{fourier_mlp_forward.1} parent=0 // pred_check
    _
  $region15: #{fourier_mlp_forward.1} parent=0 // pred_check_branch
    %18 = sbr.rel (0) target = $region17
  $region16: #{fourier_mlp_forward.1} parent=0 // pred_region
    _
  $region17: #{fourier_mlp_forward.1} parent=0 // pred_fallthru
    _
  // Predicated region
  $region18: #{fourier_mlp_forward.1} parent=0 // pred_check
    _
  $region19: #{fourier_mlp_forward.1} parent=0 // pred_check_branch
    %20 = sbr.rel (0) target = $region21
  $region20: #{fourier_mlp_forward.1} parent=0 // pred_region
    _
  $region21: #{fourier_mlp_forward.1} parent=0 // pred_fallthru
    _
  // Predicated region
  $region22: #{fourier_mlp_forward.1} parent=0 // pred_check
    _
  $region23: #{fourier_mlp_forward.1} parent=0 // pred_check_branch
    %22 = sbr.rel (0) target = $region25
  $region24: #{fourier_mlp_forward.1} parent=0 // pred_region
    _
  $region25: #{fourier_mlp_forward.1} parent=0 // pred_fallthru
    _
  %v23 = vld [vmem:[%s0] sm:$0xff]
  %v24 = vld [vmem:[%s1] sm:$0xff]
  %v25 = vld [vmem:[%s1 + $0x8] sm:$0xff]
  %v26 = vld [vmem:[%s1 + $0x10] sm:$0xff]
  %v27 = vld [vmem:[%s2] sm:$0x1]
  %v29 = vlaneseq
  %v30 = vshrl.u32 %v29, 7
  %v31 = vsub.s32 0, %v30
  %v32 = vrot.slane %v27, %v31
  %vm34 = vcmask 195584
  %v36 = vsel %vm34, %v23, 0
  %38 = vmatprep.subr.mxu0 0.0
  %39 = vmatpush1.msra.mxu0 0.0
  %40 = vmatprep.subr.mxu0 0.0
  %41 = vmatpush1.msra.mxu0 0.0
  %42 = vmatprep.subr.mxu0 0.0
  %43 = vmatpush1.msra.mxu0 0.0
  %44 = vmatprep.subr.mxu0 0.0
  %45 = vmatpush1.msra.mxu0 0.0
  %46 = vmatprep.subr.mxu0 0.0
  %47 = vmatpush1.msra.mxu0 0.0
  %48 = vmatprep.subr.mxu0 0.0
  %49 = vmatpush1.msra.mxu0 0.0
  %50 = vmatprep.subr.mxu0 0.0
  %51 = vmatpush1.msra.mxu0 0.0
  %52 = vmatprep.subr.mxu0 0.0
  %53 = vmatpush1.msra.mxu0 0.0
  %54 = vmatprep.subr.mxu0 0.0
  %55 = vmatpush1.msra.mxu0 0.0
  %56 = vmatprep.subr.mxu0 0.0
  %57 = vmatpush1.msra.mxu0 0.0
  %58 = vmatprep.subr.mxu0 0.0
  %59 = vmatpush1.msra.mxu0 0.0
  %60 = vmatprep.subr.mxu0 0.0
  %61 = vmatpush1.msra.mxu0 0.0
  %62 = vmatprep.subr.mxu0 0.0
  %63 = vmatpush1.msra.mxu0 0.0
  %64 = vmatprep.subr.mxu0 0.0
  %65 = vmatpush1.msra.mxu0 %v26
  %66 = vmatprep.subr.mxu0 0.0
  %67 = vmatpush1.msra.mxu0 %v25
  %68 = vmatprep.subr.mxu0 0.0
  %69 = vmatpush1.msra.mxu0 %v24
  %70 = vmatprep.subr.mxu0 0.0
  %71 = vmatpush2.msra.mxu0 0.0
  %72 = vmatprep.subr.mxu0 0.0
  %73 = vmatpush2.msra.mxu0 0.0
  %74 = vmatprep.subr.mxu0 0.0
  %75 = vmatpush2.msra.mxu0 0.0
  %76 = vmatprep.subr.mxu0 0.0
  %77 = vmatpush2.msra.mxu0 0.0
  %78 = vmatprep.subr.mxu0 0.0
  %79 = vmatpush2.msra.mxu0 0.0
  %80 = vmatprep.subr.mxu0 0.0
  %81 = vmatpush2.msra.mxu0 0.0
  %82 = vmatprep.subr.mxu0 0.0
  %83 = vmatpush2.msra.mxu0 0.0
  %84 = vmatprep.subr.mxu0 0.0
  %85 = vmatpush2.msra.mxu0 0.0
  %86 = vmatprep.subr.mxu0 0.0
  %87 = vmatpush2.msra.mxu0 0.0
  %88 = vmatprep.subr.mxu0 0.0
  %89 = vmatpush2.msra.mxu0 0.0
  %90 = vmatprep.subr.mxu0 0.0
  %91 = vmatpush2.msra.mxu0 0.0
  %92 = vmatprep.subr.mxu0 0.0
  %93 = vmatpush2.msra.mxu0 0.0
  %94 = vmatprep.subr.mxu0 0.0
  %95 = vmatpush2.msra.mxu0 0.0
  %96 = vmatprep.subr.mxu0 0.0
  %97 = vmatpush2.msra.mxu0 0.0
  %98 = vmatprep.subr.mxu0 0.0
  %99 = vmatpush2.msra.mxu0 0.0
  %100 = vmatprep.subr.mxu0 0.0
  %101 = vmatpush2.msra.mxu0 0.0
  %102 = vmatprep.mubr.f32.mxu0 0.0
  %103 = vmatmul.mubr.f32.gmra.mxu0 %v36
  %v104 = vpop.f32.mrf.mxu0
  %v105 = vadd.f32 %v32, %v104
  %v106 = vpop.f32.mrf.mxu0
  %107 = vdwg.mxu0
  %v108 = vand.u32 2147483647, %v105
  %vm109 = vcmp.le.f32.partialorder %v108, 0.7853982
  %vm110 = vcmp.lt.s32.totalorder %v105, 0
  %v111 = vand.u32 %v105, 2139095040
  %v112 = vshrl.u32 %v111, 23
  %v113 = vsub.s32 %v112, 127
  %v114 = vand.u32 2147483647, %v105
  %v115 = vand.u32 %v114, 8388607
  %v116 = vor.u32 %v115, 8388608
  %v117 = vsub.s32 0, %v116
  %v118 = vadd.s32 %v113, 1
  %vm119 = vcmp.gt.s32.totalorder %v118, 0
  %v120 = vsel %vm119, %v118, 0
  %v121 = vshrl.u32 %v120, 5
  %v122 = vand.u32 %v120, 31
  %v123 = vsub.s32 32, %v122
  %v124 = vshrl.u32 683565275, %v123
  %v125 = vshll.u32 683565275, %v122
  %v126 = vshrl.u32 2475754826, %v123
  %v127 = vor.u32 %v125, %v126
  %v128 = vshll.u32 2475754826, %v122
  %v129 = vshrl.u32 2131351028, %v123
  %v130 = vor.u32 %v128, %v129
  %v131 = vshll.u32 2131351028, %v122
  %v132 = vshrl.u32 2102212464, %v123
  %v133 = vor.u32 %v131, %v132
  %v134 = vshll.u32 2102212464, %v122
  %v135 = vshrl.u32 920167782, %v123
  %v136 = vor.u32 %v134, %v135
  %v137 = vshll.u32 920167782, %v122
  %v138 = vshrl.u32 1326507024, %v123
  %v139 = vor.u32 %v137, %v138
  %vm140 = vcmp.lt.s32.totalorder %v121, 1
  %vm141 = vcmp.lt.s32.totalorder %v121, 2
  %vm142 = vcmp.lt.s32.totalorder %v121, 3
  %vm143 = vcmp.lt.s32.totalorder %v121, 4
  %v144 = vsel %vm140, %v124, %v127
  %v145 = vsel %vm143, %v133, 2102212464
  %v146 = vsel %vm142, %v130, %v145
  %v147 = vsel %vm141, %v144, %v146
  %v148 = vsel %vm140, %v127, %v130
  %v149 = vsel %vm143, %v136, 920167782
  %v150 = vsel %vm142, %v133, %v149
  %v151 = vsel %vm141, %v148, %v150
  %v152 = vsel %vm140, %v130, %v133
  %v153 = vsel %vm143, %v139, 1326507024
  %v154 = vsel %vm142, %v136, %v153
  %v155 = vsel %vm141, %v152, %v154
  %v156 = vshll.u32 %v116, 8
  %v157 = vmul.u32.u64.compose %v156, %v155
  %v158 = vextract.low.u32 %v157
  %v159 = vextract.high.u32 %v157
  %v160 = vmul.u32.u64.compose %v156, %v151
  %v161 = vextract.low.u32 %v160
  %v162 = vextract.high.u32 %v160
  %v163 = vmul.u32 %v156, %v147
  %v164 = vadd.s32 %v159, %v161
  %vm165 = vc.u32 %v159, %v161
  %v166 = vadd.s32 %v162, 1
  %v167 = vsel %vm165, %v166, %v162
  %v168 = vadd.s32 %v163, %v167
  %v169 = vadd.s32 %v168, 536870912
  %v170 = vshrl.u32 %v169, 30
  %v171 = vshll.u32 %v170, 30
  %v172 = vsub.s32 %v168, %v171
  %vm173 = vcmp.lt.s32.totalorder %v172, 0
  %v174 = vsub.s32 0, %v172
  %v175 = vsel %vm173, %v174, %v172
  %v176 = vclz %v175
  %v177 = vsub.s32 %v176, 2
  %vm178 = vcmp.gt.s32.totalorder 0, %v177
  %v179 = vsel %vm178, 0, %v177
  %v180 = vsub.s32 32, %v179
  %v181 = vshll.u32 %v172, %v179
  %v182 = vshrl.u32 %v164, %v180
  %v183 = vor.u32 %v181, %v182
  %v184 = vsub.s32 4294967266, %v179
  %v185 = vadd.s32 %v184, 127
  %v186 = vshll.u32 %v185, 23
  %v187 = vor.u32 4788187, %v186
  %v188 = vand.u32 2147483647, %v187
  %v190 = vcvt.s32.f32 %v183
  %v191 = vmul.f32 %v190, %v188
  %v192 = vxor.u32 %v191, 2147483648
  %v193 = vsel %vm110, %v192, %v191
  %v194 = vsub.s32 4, %v170
  %v195 = vsel %vm110, %v194, %v170
  %v196 = vsel %vm109, %v105, %v193
  %v197 = vsel %vm109, 0, %v195
  %v198 = vcosq.f32.pop %v196
  %v199 = vsinq.f32.pop %v196
  %vm200 = vweird.f32 %v105
  %v201 = vadd.s32 %v197, 3
  %v202 = vand.u32 %v201, 3
  %vm203 = vcmp.lt.s32.totalorder %v202, 2
  %vm204 = vcmp.eq.s32.totalorder %v202, 0
  %v205 = vxor.u32 %v199, 2147483648
  %v206 = vsel %vm204, %v198, %v205
  %vm207 = vcmp.eq.s32.totalorder %v202, 2
  %v208 = vxor.u32 %v198, 2147483648
  %v209 = vsel %vm207, %v208, %v199
  %v210 = vsel %vm203, %v206, %v209
  %v211 = vsel %vm200, nan, %v210
  %v212 = vld [vmem:[%s3] sm:$0xff]
  %v213 = vld [vmem:[%s3 + $0x8] sm:$0xff]
  %v214 = vld [vmem:[%s3 + $0x10] sm:$0xff]
  %v215 = vld [vmem:[%s4] sm:$0xff]
  %v216 = vld [vmem:[%s4 + $0x8] sm:$0xff]
  %v217 = vld [vmem:[%s4 + $0x10] sm:$0xff]
  %v218 = vld [vmem:[%s4 + $0x18] sm:$0xff]
  %v219 = vld [vmem:[%s4 + $0x20] sm:$0xff]
  %v220 = vld [vmem:[%s4 + $0x28] sm:$0xff]
  %v221 = vld [vmem:[%s4 + $0x30] sm:$0xff]
  %v222 = vld [vmem:[%s4 + $0x38] sm:$0xff]
  %vm223 = vcmask 523264
  %v225 = vsel %vm223, %v211, 0
  %227 = vmatprep.subr.mxu0 0.0
  %228 = vmatpush1.msra.mxu0 0.0
  %229 = vmatprep.subr.mxu0 0.0
  %230 = vmatpush1.msra.mxu0 0.0
  %231 = vmatprep.subr.mxu0 0.0
  %232 = vmatpush1.msra.mxu0 0.0
  %233 = vmatprep.subr.mxu0 0.0
  %234 = vmatpush1.msra.mxu0 0.0
  %235 = vmatprep.subr.mxu0 0.0
  %236 = vmatpush1.msra.mxu0 0.0
  %237 = vmatprep.subr.mxu0 0.0
  %238 = vmatpush1.msra.mxu0 0.0
  %239 = vmatprep.subr.mxu0 0.0
  %240 = vmatpush1.msra.mxu0 0.0
  %241 = vmatprep.subr.mxu0 0.0
  %242 = vmatpush1.msra.mxu0 0.0
  %243 = vmatprep.subr.mxu0 0.0
  %244 = vmatpush1.msra.mxu0 %v222
  %245 = vmatprep.subr.mxu0 0.0
  %246 = vmatpush1.msra.mxu0 %v221
  %247 = vmatprep.subr.mxu0 0.0
  %248 = vmatpush1.msra.mxu0 %v220
  %249 = vmatprep.subr.mxu0 0.0
  %250 = vmatpush1.msra.mxu0 %v219
  %251 = vmatprep.subr.mxu0 0.0
  %252 = vmatpush1.msra.mxu0 %v218
  %253 = vmatprep.subr.mxu0 0.0
  %254 = vmatpush1.msra.mxu0 %v217
  %255 = vmatprep.subr.mxu0 0.0
  %256 = vmatpush1.msra.mxu0 %v216
  %257 = vmatprep.subr.mxu0 0.0
  %258 = vmatpush1.msra.mxu0 %v215
  %259 = vmatprep.subr.mxu0 0.0
  %260 = vmatpush2.msra.mxu0 0.0
  %261 = vmatprep.subr.mxu0 0.0
  %262 = vmatpush2.msra.mxu0 0.0
  %263 = vmatprep.subr.mxu0 0.0
  %264 = vmatpush2.msra.mxu0 0.0
  %265 = vmatprep.subr.mxu0 0.0
  %266 = vmatpush2.msra.mxu0 0.0
  %267 = vmatprep.subr.mxu0 0.0
  %268 = vmatpush2.msra.mxu0 0.0
  %269 = vmatprep.subr.mxu0 0.0
  %270 = vmatpush2.msra.mxu0 0.0
  %271 = vmatprep.subr.mxu0 0.0
  %272 = vmatpush2.msra.mxu0 0.0
  %273 = vmatprep.subr.mxu0 0.0
  %274 = vmatpush2.msra.mxu0 0.0
  %275 = vmatprep.subr.mxu0 0.0
  %276 = vmatpush2.msra.mxu0 0.0
  %277 = vmatprep.subr.mxu0 0.0
  %278 = vmatpush2.msra.mxu0 0.0
  %279 = vmatprep.subr.mxu0 0.0
  %280 = vmatpush2.msra.mxu0 0.0
  %281 = vmatprep.subr.mxu0 0.0
  %282 = vmatpush2.msra.mxu0 0.0
  %283 = vmatprep.subr.mxu0 0.0
  %284 = vmatpush2.msra.mxu0 0.0
  %285 = vmatprep.subr.mxu0 0.0
  %286 = vmatpush2.msra.mxu0 0.0
  %287 = vmatprep.subr.mxu0 0.0
  %288 = vmatpush2.msra.mxu0 0.0
  %289 = vmatprep.subr.mxu0 0.0
  %290 = vmatpush2.msra.mxu0 0.0
  %291 = vmatprep.mubr.f32.mxu0 0.0
  %292 = vmatmul.mubr.f32.gmra.mxu0 %v225
  %v293 = vpop.f32.mrf.mxu0
  %v294 = vadd.f32 0.0, %v293
  %v295 = vpop.f32.mrf.mxu0
  %296 = vdwg.mxu0
  %297 = vmatprep.subr.mxu0 0.0
  %298 = vmatpush1.msra.mxu0 0.0
  %299 = vmatprep.subr.mxu0 0.0
  %300 = vmatpush1.msra.mxu0 0.0
  %301 = vmatprep.subr.mxu0 0.0
  %302 = vmatpush1.msra.mxu0 0.0
  %303 = vmatprep.subr.mxu0 0.0
  %304 = vmatpush1.msra.mxu0 0.0
  %305 = vmatprep.subr.mxu0 0.0
  %306 = vmatpush1.msra.mxu0 0.0
  %307 = vmatprep.subr.mxu0 0.0
  %308 = vmatpush1.msra.mxu0 0.0
  %309 = vmatprep.subr.mxu0 0.0
  %310 = vmatpush1.msra.mxu0 0.0
  %311 = vmatprep.subr.mxu0 0.0
  %312 = vmatpush1.msra.mxu0 0.0
  %313 = vmatprep.subr.mxu0 0.0
  %314 = vmatpush1.msra.mxu0 0.0
  %315 = vmatprep.subr.mxu0 0.0
  %316 = vmatpush1.msra.mxu0 0.0
  %317 = vmatprep.subr.mxu0 0.0
  %318 = vmatpush1.msra.mxu0 0.0
  %319 = vmatprep.subr.mxu0 0.0
  %320 = vmatpush1.msra.mxu0 0.0
  %321 = vmatprep.subr.mxu0 0.0
  %322 = vmatpush1.msra.mxu0 0.0
  %323 = vmatprep.subr.mxu0 0.0
  %324 = vmatpush1.msra.mxu0 %v214
  %325 = vmatprep.subr.mxu0 0.0
  %326 = vmatpush1.msra.mxu0 %v213
  %327 = vmatprep.subr.mxu0 0.0
  %328 = vmatpush1.msra.mxu0 %v212
  %329 = vmatprep.subr.mxu0 0.0
  %330 = vmatpush2.msra.mxu0 0.0
  %331 = vmatprep.subr.mxu0 0.0
  %332 = vmatpush2.msra.mxu0 0.0
  %333 = vmatprep.subr.mxu0 0.0
  %334 = vmatpush2.msra.mxu0 0.0
  %335 = vmatprep.subr.mxu0 0.0
  %336 = vmatpush2.msra.mxu0 0.0
  %337 = vmatprep.subr.mxu0 0.0
  %338 = vmatpush2.msra.mxu0 0.0
  %339 = vmatprep.subr.mxu0 0.0
  %340 = vmatpush2.msra.mxu0 0.0
  %341 = vmatprep.subr.mxu0 0.0
  %342 = vmatpush2.msra.mxu0 0.0
  %343 = vmatprep.subr.mxu0 0.0
  %344 = vmatpush2.msra.mxu0 0.0
  %345 = vmatprep.subr.mxu0 0.0
  %346 = vmatpush2.msra.mxu0 0.0
  %347 = vmatprep.subr.mxu0 0.0
  %348 = vmatpush2.msra.mxu0 0.0
  %349 = vmatprep.subr.mxu0 0.0
  %350 = vmatpush2.msra.mxu0 0.0
  %351 = vmatprep.subr.mxu0 0.0
  %352 = vmatpush2.msra.mxu0 0.0
  %353 = vmatprep.subr.mxu0 0.0
  %354 = vmatpush2.msra.mxu0 0.0
  %355 = vmatprep.subr.mxu0 0.0
  %356 = vmatpush2.msra.mxu0 0.0
  %357 = vmatprep.subr.mxu0 0.0
  %358 = vmatpush2.msra.mxu0 0.0
  %359 = vmatprep.subr.mxu0 0.0
  %360 = vmatpush2.msra.mxu0 0.0
  %361 = vmatprep.mubr.f32.mxu0 0.0
  %362 = vmatmul.mubr.f32.gmra.mxu0 %v36
  %v363 = vpop.f32.mrf.mxu0
  %v364 = vadd.f32 %v294, %v363
  %v365 = vpop.f32.mrf.mxu0
  %366 = vdwg.mxu0
  %v367 = vld [vmem:[%s5] sm:$0x1]
  %v369 = vlaneseq
  %v370 = vshrl.u32 %v369, 7
  %v371 = vsub.s32 0, %v370
  %v372 = vrot.slane %v367, %v371
  %v374 = vadd.f32 %v364, %v372
  %vm375 = vcmask 31744
  %376 = vst.msk [vmem:[%s6] sm:$0xff] %vm375, %v374
  // Predicated region
  $region26: #{fourier_mlp_forward.1} parent=0 // pred_check
    _
  $region27: #{fourier_mlp_forward.1} parent=0 // pred_check_branch
    %378 = sbr.rel (0) target = $region29
  $region28: #{fourier_mlp_forward.1} parent=0 // pred_region
    _
  $region29: #{fourier_mlp_forward.1} parent=0 // pred_fallthru
    _
  // Predicated region
  $region30: #{fourier_mlp_forward.1} parent=0 // pred_check
    _
  $region31: #{fourier_mlp_forward.1} parent=0 // pred_check_branch
    %380 = sbr.rel (0) target = $region33
  $region32: #{fourier_mlp_forward.1} parent=0 // pred_region
    _
  $region33: #{fourier_mlp_forward.1} parent=0 // pred_fallthru
    _

</llo_original>
